<compile_context>
chip_gen: v6e
topology: v6e:2x2x1
jax: 0.10.0
libtpu: 0.0.40
codegen_flags: <defaults>
</compile_context>

<pallas_src>
import functools
import math

import jax
import jax.numpy as jnp
import numpy as np
from jax.experimental import pallas as pl
from jax.experimental.pallas import tpu as pltpu


# ----------------------------------------------------------------------------
# sum_k taps[k] * get(k), pairing mirror-symmetric taps (one mul per pair).
# `get(k)` returns the k-shifted slab (a ref-slice load).
# ----------------------------------------------------------------------------
def _sep_conv(get, taps):
    n = len(taps)
    symmetric = all(taps[i] == taps[n - 1 - i] for i in range(n // 2))
    terms = []
    if symmetric:
        for i in range(n // 2):
            terms.append(taps[i] * (get(i) + get(n - 1 - i)))
        if n % 2:
            terms.append(taps[n // 2] * get(n // 2))
    else:
        terms = [taps[i] * get(i) for i in range(n)]
    acc = terms[0]
    for t in terms[1:]:
        acc = acc + t
    return acc


# ----------------------------------------------------------------------------
# Kernel: fused separable blur on a block of TB images.
#   x_ref  : (TB, H,  W )  unpadded input block (HBM -> VMEM via BlockSpec)
#   o_ref  : (TB, H,  W )  blurred output block
#   xp_ref : (TB, Hp, Wp)  VMEM scratch, padded image (Hp = H+K-1, Wp = W+K-1)
#   tmp_ref: (TB, Hp, W )  VMEM scratch, result of the horizontal pass
#   taps   : static Python floats (normalized Gaussian kernel, baked in)
# ----------------------------------------------------------------------------
def _gaussian_blur_kernel(x_ref, o_ref, xp_ref, tmp_ref, *,
                          taps, sp, ep, mode, value):
    tb, h, w = o_ref.shape
    wp = w + sp + ep

    x = x_ref[...]
    if x.dtype != xp_ref.dtype:
        x = x.astype(xp_ref.dtype)

    # ---- Build the padded image in VMEM scratch (halo synthesized on-chip;
    # ---- no padded array ever round-trips through HBM). ----
    xp_ref[:, sp:sp + h, sp:sp + w] = x

    if mode == "constant":
        if sp:
            xp_ref[:, sp:sp + h, 0:sp] = jnp.full((tb, h, sp), value, xp_ref.dtype)
        if ep:
            xp_ref[:, sp:sp + h, sp + w:wp] = jnp.full((tb, h, ep), value, xp_ref.dtype)
        if sp:
            xp_ref[:, 0:sp, :] = jnp.full((tb, sp, wp), value, xp_ref.dtype)
        if ep:
            xp_ref[:, sp + h:sp + h + ep, :] = jnp.full((tb, ep, wp), value, xp_ref.dtype)
    else:
        lcol = {"reflect": lambda j: sp - j,
                "replicate": lambda j: 0,
                "circular": lambda j: w - sp + j}[mode]
        rcol = {"reflect": lambda j: w - 2 - j,
                "replicate": lambda j: w - 1,
                "circular": lambda j: j}[mode]
        trow = {"reflect": lambda i: 2 * sp - i,
                "replicate": lambda i: sp,
                "circular": lambda i: h + i}[mode]
        brow = {"reflect": lambda i: sp + h - 2 - i,
                "replicate": lambda i: sp + h - 1,
                "circular": lambda i: sp + i}[mode]
        # Halo columns come from the (unpadded) input block ...
        for j in range(sp):
            s = lcol(j)
            xp_ref[:, sp:sp + h, j:j + 1] = x[:, :, s:s + 1]
        for j in range(ep):
            s = rcol(j)
            xp_ref[:, sp:sp + h, sp + w + j:sp + w + j + 1] = x[:, :, s:s + 1]
        # ... halo rows copy full already-padded rows so corners come out right.
        for i in range(sp):
            s = trow(i)
            xp_ref[:, i:i + 1, :] = xp_ref[:, s:s + 1, :]
        for i in range(ep):
            s = brow(i)
            xp_ref[:, sp + h + i:sp + h + i + 1, :] = xp_ref[:, s:s + 1, :]

    # ---- Horizontal pass (W on the lane axis): ref-sliced shifted reads,
    # ---- symmetric tap pairing, statically unrolled. ----
    tmp_ref[...] = _sep_conv(lambda k: xp_ref[:, :, k:k + w], taps)

    # ---- Vertical pass (H on the sublane axis); result never leaves VMEM. ----
    acc = _sep_conv(lambda k: tmp_ref[:, k:k + h, :], taps)
    o_ref[...] = acc.astype(o_ref.dtype)


def _pick_batch_tile(b, h, w, k, itemsize, budget_bytes):
    """Batch tile chosen against a VMEM budget; no exact-divisor requirement."""
    hp, wp = h + k - 1, w + k - 1
    # Per-image footprint: double-buffered in/out blocks (2x h*w each),
    # padded scratch (hp*wp), horizontal-pass scratch (hp*w), plus ~2 live
    # accumulation slabs (hp*w), all in the compute dtype.
    per_img = itemsize * (4 * h * w + hp * wp + 3 * hp * w)
    tb = max(1, min(b, budget_bytes // max(per_img, 1)))
    # Keep the grid at ~4 steps when possible: the "parallel" batch axis can
    # then shard across v7x's two TensorCores and the pipeliner can overlap.
    if b > 1:
        tb = min(tb, max(1, -(-b // 4)))
    return int(tb)


def gaussian_blur2d(x, taps, *, mode="reflect", value=0.0,
                    vmem_budget_bytes=16 * 1024 * 1024):
    """x: (N, C, H, W); taps: tuple of static Python floats (length K)."""
    if mode not in ("reflect", "replicate", "circular", "constant"):
        raise ValueError(f"unsupported padding mode: {mode!r}")
    n, c, h, w = x.shape
    k = len(taps)
    sp, ep = (k - 1) // 2, k // 2
    if mode == "reflect" and (sp >= h or sp >= w or ep >= h or ep >= w):
        raise ValueError("reflect padding requires pad < spatial size")

    b = n * c
    xb = x.reshape(b, h, w)
    hp, wp = h + k - 1, w + k - 1

    # MACs run in the input dtype (bf16 stays bf16 on v6e/v7x); non-float
    # inputs fall back to f32 accumulation.
    cdtype = x.dtype if jnp.issubdtype(x.dtype, jnp.floating) else jnp.float32
    itemsize = jnp.dtype(cdtype).itemsize

    tb = _pick_batch_tile(b, h, w, k, itemsize, vmem_budget_bytes)
    grid = (pl.cdiv(b, tb),)   # ragged last block is masked by Pallas

    out = pl.pallas_call(
        functools.partial(_gaussian_blur_kernel, taps=tuple(taps),
                          sp=sp, ep=ep, mode=mode, value=value),
        out_shape=jax.ShapeDtypeStruct((b, h, w), x.dtype),
        grid_spec=pltpu.PrefetchScalarGridSpec(
            num_scalar_prefetch=0,
            grid=grid,
            in_specs=[pl.BlockSpec((tb, h, w), lambda i: (i, 0, 0))],
            out_specs=pl.BlockSpec((tb, h, w), lambda i: (i, 0, 0)),
            scratch_shapes=[
                pltpu.VMEM((tb, hp, wp), cdtype),   # padded image
                pltpu.VMEM((tb, hp, w), cdtype),    # horizontal-pass result
            ],
        ),
        compiler_params=pltpu.CompilerParams(
            dimension_semantics=("parallel",),       # v7x: shard batch over 2 TCs
            vmem_limit_bytes=32 * 1024 * 1024,       # raise v5e default, safe on v7x
        ),
    )(xb)
    return out.reshape(n, c, h, w)


# ----------------------------------------------------------------------------
# Module mirror: state (the static Gaussian taps) lives in Python; the heavy
# math (both separable conv passes + padding) runs in the Pallas kernel above.
# ----------------------------------------------------------------------------
class GaussianBlur2d:
    def __init__(self, sigma, window=0, mode="reflect", value=0):
        self.mode = mode
        self.value = value
        if not window:
            window = max(math.ceil((sigma * 6 + 1) / 2) * 2 - 1, 3)
        if sigma:
            g = np.exp(-(np.arange(window) - window // 2) ** 2 / 2.0 / sigma ** 2)
            g = g / g.sum()
        else:
            g = np.ones([1])
        # Static buffer -> baked into the kernel as immediate constants.
        self.kernel = tuple(float(v) for v in g)

    def forward(self, x):
        return gaussian_blur2d(x, self.kernel, mode=self.mode, value=self.value)

    __call__ = forward


# ----------------------------------------------------------------------------
# Reference: replicate the exact torch forward with lax.conv.
# ----------------------------------------------------------------------------
def _conv_reference(x, taps):
    n, c, h, w = x.shape
    taps = jnp.asarray(taps, jnp.float32)
    kk = taps.shape[0]
    sp, ep = (kk - 1) // 2, kk // 2
    xb = x.reshape(n * c, 1, h, w)
    xpad = jnp.pad(xb, ((0, 0), (0, 0), (sp, ep), (sp, ep)), mode="reflect")
    kh = taps.reshape(1, 1, 1, kk)
    kv = taps.reshape(1, 1, kk, 1)
    t = jax.lax.conv_general_dilated(
        xpad, kh, (1, 1), "VALID",
        dimension_numbers=("NCHW", "OIHW", "NCHW"),
        precision=jax.lax.Precision.HIGHEST)
    r = jax.lax.conv_general_dilated(
        t, kv, (1, 1), "VALID",
        dimension_numbers=("NCHW", "OIHW", "NCHW"),
        precision=jax.lax.Precision.HIGHEST)
    return r.reshape(n, c, h, w)


if __name__ == "__main__":
    key = jax.random.PRNGKey(0)
    n, c, h, w = 2, 4, 16, 16
    x = jax.random.normal(key, (n, c, h, w), dtype=jnp.float32)

    blur = GaussianBlur2d(sigma=1.0)          # -> window 7, reflect padding
    out = jax.block_until_ready(blur(x))
    assert out.shape == (n, c, h, w)

    ref = _conv_reference(x, blur.kernel)
    assert jnp.allclose(out, ref, rtol=1e-5, atol=1e-5), (
        float(jnp.max(jnp.abs(out - ref))))

    # Ragged batch grid (b = n*c = 5 does not divide the batch tile).
    x2 = jax.random.normal(jax.random.PRNGKey(1), (1, 5, 16, 16), jnp.float32)
    out2 = jax.block_until_ready(blur(x2))
    ref2 = _conv_reference(x2, blur.kernel)
    assert jnp.allclose(out2, ref2, rtol=1e-5, atol=1e-5), (
        float(jnp.max(jnp.abs(out2 - ref2))))

    # sigma=0 path degenerates to identity (kernel == [1], zero padding).
    ident = jax.block_until_ready(GaussianBlur2d(sigma=0)(x))
    assert jnp.allclose(ident, x, rtol=1e-6, atol=1e-6)

    print("KERNEL_OK")
</pallas_src>

<mosaic_0001>
module attributes {stable_mosaic.version = 11 : i64} {
  func.func @_gaussian_blur_kernel(%arg0: i32, %arg1: memref<2x16x16xf32, #tpu.memory_space<vmem>>, %arg2: memref<2x16x16xf32, #tpu.memory_space<vmem>>, %arg3: memref<2x22x22xf32, #tpu.memory_space<vmem>>, %arg4: memref<2x22x16xf32, #tpu.memory_space<vmem>>) attributes {dimension_semantics = [#tpu.dimension_semantics<parallel>], iteration_bounds = array<i64: 4>, scalar_prefetch = 0 : i64, scratch_operands = 2 : i64, tpu.core_type = #tpu.core_type<tc>, window_params = [{transform_indices = @transform_0, window_bounds = array<i64: 2, 16, 16>}, {transform_indices = @transform_1, window_bounds = array<i64: 2, 16, 16>}]} {
    %c0 = arith.constant 0 : index
    %c0_0 = arith.constant 0 : index
    %c0_1 = arith.constant 0 : index
    %0 = vector.load %arg1[%c0, %c0_0, %c0_1] : memref<2x16x16xf32, #tpu.memory_space<vmem>>, vector<2x16x16xf32>
    %c0_2 = arith.constant 0 : index
    %c3 = arith.constant 3 : index
    %c3_3 = arith.constant 3 : index
    %1 = vector.load %arg3[%c0_2, %c3, %c3_3] : memref<2x22x22xf32, #tpu.memory_space<vmem>>, vector<2x16x16xf32>
    tpu.vector_store %arg3[%c0_2, %c3, %c3_3], %0 {strides = array<i32>} : memref<2x22x22xf32, #tpu.memory_space<vmem>>, vector<2x16x16xf32>,
    %2 = vector.extract_strided_slice %0 {offsets = [0, 0, 3], sizes = [2, 16, 1], strides = [1, 1, 1]} : vector<2x16x16xf32> to vector<2x16x1xf32>
    %c0_4 = arith.constant 0 : index
    %c3_5 = arith.constant 3 : index
    %c0_6 = arith.constant 0 : index
    %3 = vector.load %arg3[%c0_4, %c3_5, %c0_6] : memref<2x22x22xf32, #tpu.memory_space<vmem>>, vector<2x16x1xf32>
    tpu.vector_store %arg3[%c0_4, %c3_5, %c0_6], %2 {strides = array<i32>} : memref<2x22x22xf32, #tpu.memory_space<vmem>>, vector<2x16x1xf32>,
    %4 = vector.extract_strided_slice %0 {offsets = [0, 0, 2], sizes = [2, 16, 1], strides = [1, 1, 1]} : vector<2x16x16xf32> to vector<2x16x1xf32>
    %c0_7 = arith.constant 0 : index
    %c3_8 = arith.constant 3 : index
    %c1 = arith.constant 1 : index
    %5 = vector.load %arg3[%c0_7, %c3_8, %c1] : memref<2x22x22xf32, #tpu.memory_space<vmem>>, vector<2x16x1xf32>
    tpu.vector_store %arg3[%c0_7, %c3_8, %c1], %4 {strides = array<i32>} : memref<2x22x22xf32, #tpu.memory_space<vmem>>, vector<2x16x1xf32>,
    %6 = vector.extract_strided_slice %0 {offsets = [0, 0, 1], sizes = [2, 16, 1], strides = [1, 1, 1]} : vector<2x16x16xf32> to vector<2x16x1xf32>
    %c0_9 = arith.constant 0 : index
    %c3_10 = arith.constant 3 : index
    %c2 = arith.constant 2 : index
    %7 = vector.load %arg3[%c0_9, %c3_10, %c2] : memref<2x22x22xf32, #tpu.memory_space<vmem>>, vector<2x16x1xf32>
    tpu.vector_store %arg3[%c0_9, %c3_10, %c2], %6 {strides = array<i32>} : memref<2x22x22xf32, #tpu.memory_space<vmem>>, vector<2x16x1xf32>,
    %8 = vector.extract_strided_slice %0 {offsets = [0, 0, 14], sizes = [2, 16, 1], strides = [1, 1, 1]} : vector<2x16x16xf32> to vector<2x16x1xf32>
    %c0_11 = arith.constant 0 : index
    %c3_12 = arith.constant 3 : index
    %c19 = arith.constant 19 : index
    %9 = vector.load %arg3[%c0_11, %c3_12, %c19] : memref<2x22x22xf32, #tpu.memory_space<vmem>>, vector<2x16x1xf32>
    tpu.vector_store %arg3[%c0_11, %c3_12, %c19], %8 {strides = array<i32>} : memref<2x22x22xf32, #tpu.memory_space<vmem>>, vector<2x16x1xf32>,
    %10 = vector.extract_strided_slice %0 {offsets = [0, 0, 13], sizes = [2, 16, 1], strides = [1, 1, 1]} : vector<2x16x16xf32> to vector<2x16x1xf32>
    %c0_13 = arith.constant 0 : index
    %c3_14 = arith.constant 3 : index
    %c20 = arith.constant 20 : index
    %11 = vector.load %arg3[%c0_13, %c3_14, %c20] : memref<2x22x22xf32, #tpu.memory_space<vmem>>, vector<2x16x1xf32>
    tpu.vector_store %arg3[%c0_13, %c3_14, %c20], %10 {strides = array<i32>} : memref<2x22x22xf32, #tpu.memory_space<vmem>>, vector<2x16x1xf32>,
    %12 = vector.extract_strided_slice %0 {offsets = [0, 0, 12], sizes = [2, 16, 1], strides = [1, 1, 1]} : vector<2x16x16xf32> to vector<2x16x1xf32>
    %c0_15 = arith.constant 0 : index
    %c3_16 = arith.constant 3 : index
    %c21 = arith.constant 21 : index
    %13 = vector.load %arg3[%c0_15, %c3_16, %c21] : memref<2x22x22xf32, #tpu.memory_space<vmem>>, vector<2x16x1xf32>
    tpu.vector_store %arg3[%c0_15, %c3_16, %c21], %12 {strides = array<i32>} : memref<2x22x22xf32, #tpu.memory_space<vmem>>, vector<2x16x1xf32>,
    %c0_17 = arith.constant 0 : index
    %c6 = arith.constant 6 : index
    %c0_18 = arith.constant 0 : index
    %14 = vector.load %arg3[%c0_17, %c6, %c0_18] : memref<2x22x22xf32, #tpu.memory_space<vmem>>, vector<2x1x22xf32>
    %c0_19 = arith.constant 0 : index
    %c0_20 = arith.constant 0 : index
    %c0_21 = arith.constant 0 : index
    %15 = vector.load %arg3[%c0_19, %c0_20, %c0_21] : memref<2x22x22xf32, #tpu.memory_space<vmem>>, vector<2x1x22xf32>
    tpu.vector_store %arg3[%c0_19, %c0_20, %c0_21], %14 {strides = array<i32>} : memref<2x22x22xf32, #tpu.memory_space<vmem>>, vector<2x1x22xf32>,
    %c0_22 = arith.constant 0 : index
    %c5 = arith.constant 5 : index
    %c0_23 = arith.constant 0 : index
    %16 = vector.load %arg3[%c0_22, %c5, %c0_23] : memref<2x22x22xf32, #tpu.memory_space<vmem>>, vector<2x1x22xf32>
    %c0_24 = arith.constant 0 : index
    %c1_25 = arith.constant 1 : index
    %c0_26 = arith.constant 0 : index
    %17 = vector.load %arg3[%c0_24, %c1_25, %c0_26] : memref<2x22x22xf32, #tpu.memory_space<vmem>>, vector<2x1x22xf32>
    tpu.vector_store %arg3[%c0_24, %c1_25, %c0_26], %16 {strides = array<i32>} : memref<2x22x22xf32, #tpu.memory_space<vmem>>, vector<2x1x22xf32>,
    %c0_27 = arith.constant 0 : index
    %c4 = arith.constant 4 : index
    %c0_28 = arith.constant 0 : index
    %18 = vector.load %arg3[%c0_27, %c4, %c0_28] : memref<2x22x22xf32, #tpu.memory_space<vmem>>, vector<2x1x22xf32>
    %c0_29 = arith.constant 0 : index
    %c2_30 = arith.constant 2 : index
    %c0_31 = arith.constant 0 : index
    %19 = vector.load %arg3[%c0_29, %c2_30, %c0_31] : memref<2x22x22xf32, #tpu.memory_space<vmem>>, vector<2x1x22xf32>
    tpu.vector_store %arg3[%c0_29, %c2_30, %c0_31], %18 {strides = array<i32>} : memref<2x22x22xf32, #tpu.memory_space<vmem>>, vector<2x1x22xf32>,
    %c0_32 = arith.constant 0 : index
    %c17 = arith.constant 17 : index
    %c0_33 = arith.constant 0 : index
    %20 = vector.load %arg3[%c0_32, %c17, %c0_33] : memref<2x22x22xf32, #tpu.memory_space<vmem>>, vector<2x1x22xf32>
    %c0_34 = arith.constant 0 : index
    %c19_35 = arith.constant 19 : index
    %c0_36 = arith.constant 0 : index
    %21 = vector.load %arg3[%c0_34, %c19_35, %c0_36] : memref<2x22x22xf32, #tpu.memory_space<vmem>>, vector<2x1x22xf32>
    tpu.vector_store %arg3[%c0_34, %c19_35, %c0_36], %20 {strides = array<i32>} : memref<2x22x22xf32, #tpu.memory_space<vmem>>, vector<2x1x22xf32>,
    %c0_37 = arith.constant 0 : index
    %c16 = arith.constant 16 : index
    %c0_38 = arith.constant 0 : index
    %22 = vector.load %arg3[%c0_37, %c16, %c0_38] : memref<2x22x22xf32, #tpu.memory_space<vmem>>, vector<2x1x22xf32>
    %c0_39 = arith.constant 0 : index
    %c20_40 = arith.constant 20 : index
    %c0_41 = arith.constant 0 : index
    %23 = vector.load %arg3[%c0_39, %c20_40, %c0_41] : memref<2x22x22xf32, #tpu.memory_space<vmem>>, vector<2x1x22xf32>
    tpu.vector_store %arg3[%c0_39, %c20_40, %c0_41], %22 {strides = array<i32>} : memref<2x22x22xf32, #tpu.memory_space<vmem>>, vector<2x1x22xf32>,
    %c0_42 = arith.constant 0 : index
    %c15 = arith.constant 15 : index
    %c0_43 = arith.constant 0 : index
    %24 = vector.load %arg3[%c0_42, %c15, %c0_43] : memref<2x22x22xf32, #tpu.memory_space<vmem>>, vector<2x1x22xf32>
    %c0_44 = arith.constant 0 : index
    %c21_45 = arith.constant 21 : index
    %c0_46 = arith.constant 0 : index
    %25 = vector.load %arg3[%c0_44, %c21_45, %c0_46] : memref<2x22x22xf32, #tpu.memory_space<vmem>>, vector<2x1x22xf32>
    tpu.vector_store %arg3[%c0_44, %c21_45, %c0_46], %24 {strides = array<i32>} : memref<2x22x22xf32, #tpu.memory_space<vmem>>, vector<2x1x22xf32>,
    %c0_47 = arith.constant 0 : index
    %c0_48 = arith.constant 0 : index
    %c0_49 = arith.constant 0 : index
    %26 = vector.load %arg3[%c0_47, %c0_48, %c0_49] : memref<2x22x22xf32, #tpu.memory_space<vmem>>, vector<2x22x16xf32>
    %c0_50 = arith.constant 0 : index
    %c0_51 = arith.constant 0 : index
    %c6_52 = arith.constant 6 : index
    %27 = vector.load %arg3[%c0_50, %c0_51, %c6_52] : memref<2x22x22xf32, #tpu.memory_space<vmem>>, vector<2x22x16xf32>
    %28 = arith.addf %26, %27 : vector<2x22x16xf32>
    %cst = arith.constant 0.00443304796 : f32
    %29 = vector.broadcast %cst : f32 to vector<2x22x16xf32>
    %30 = arith.mulf %29, %28 : vector<2x22x16xf32>
    %c0_53 = arith.constant 0 : index
    %c0_54 = arith.constant 0 : index
    %c1_55 = arith.constant 1 : index
    %31 = vector.load %arg3[%c0_53, %c0_54, %c1_55] : memref<2x22x22xf32, #tpu.memory_space<vmem>>, vector<2x22x16xf32>
    %c0_56 = arith.constant 0 : index
    %c0_57 = arith.constant 0 : index
    %c5_58 = arith.constant 5 : index
    %32 = vector.load %arg3[%c0_56, %c0_57, %c5_58] : memref<2x22x22xf32, #tpu.memory_space<vmem>>, vector<2x22x16xf32>
    %33 = arith.addf %31, %32 : vector<2x22x16xf32>
    %cst_59 = arith.constant 0.0540055819 : f32
    %34 = vector.broadcast %cst_59 : f32 to vector<2x22x16xf32>
    %35 = arith.mulf %34, %33 : vector<2x22x16xf32>
    %c0_60 = arith.constant 0 : index
    %c0_61 = arith.constant 0 : index
    %c2_62 = arith.constant 2 : index
    %36 = vector.load %arg3[%c0_60, %c0_61, %c2_62] : memref<2x22x22xf32, #tpu.memory_space<vmem>>, vector<2x22x16xf32>
    %c0_63 = arith.constant 0 : index
    %c0_64 = arith.constant 0 : index
    %c4_65 = arith.constant 4 : index
    %37 = vector.load %arg3[%c0_63, %c0_64, %c4_65] : memref<2x22x22xf32, #tpu.memory_space<vmem>>, vector<2x22x16xf32>
    %38 = arith.addf %36, %37 : vector<2x22x16xf32>
    %cst_66 = arith.constant 0.242036223 : f32
    %39 = vector.broadcast %cst_66 : f32 to vector<2x22x16xf32>
    %40 = arith.mulf %39, %38 : vector<2x22x16xf32>
    %c0_67 = arith.constant 0 : index
    %c0_68 = arith.constant 0 : index
    %c3_69 = arith.constant 3 : index
    %41 = vector.load %arg3[%c0_67, %c0_68, %c3_69] : memref<2x22x22xf32, #tpu.memory_space<vmem>>, vector<2x22x16xf32>
    %cst_70 = arith.constant 0.399050266 : f32
    %42 = vector.broadcast %cst_70 : f32 to vector<2x22x16xf32>
    %43 = arith.mulf %42, %41 : vector<2x22x16xf32>
    %44 = arith.addf %30, %35 : vector<2x22x16xf32>
    %45 = arith.addf %44, %40 : vector<2x22x16xf32>
    %46 = arith.addf %45, %43 : vector<2x22x16xf32>
    %c0_71 = arith.constant 0 : index
    %c0_72 = arith.constant 0 : index
    %c0_73 = arith.constant 0 : index
    %47 = vector.load %arg4[%c0_71, %c0_72, %c0_73] : memref<2x22x16xf32, #tpu.memory_space<vmem>>, vector<2x22x16xf32>
    tpu.vector_store %arg4[%c0_71, %c0_72, %c0_73], %46 {strides = array<i32>} : memref<2x22x16xf32, #tpu.memory_space<vmem>>, vector<2x22x16xf32>,
    %c0_74 = arith.constant 0 : index
    %c0_75 = arith.constant 0 : index
    %c0_76 = arith.constant 0 : index
    %48 = vector.load %arg4[%c0_74, %c0_75, %c0_76] : memref<2x22x16xf32, #tpu.memory_space<vmem>>, vector<2x16x16xf32>
    %c0_77 = arith.constant 0 : index
    %c6_78 = arith.constant 6 : index
    %c0_79 = arith.constant 0 : index
    %49 = vector.load %arg4[%c0_77, %c6_78, %c0_79] : memref<2x22x16xf32, #tpu.memory_space<vmem>>, vector<2x16x16xf32>
    %50 = arith.addf %48, %49 : vector<2x16x16xf32>
    %cst_80 = arith.constant 0.00443304796 : f32
    %51 = vector.broadcast %cst_80 : f32 to vector<2x16x16xf32>
    %52 = arith.mulf %51, %50 : vector<2x16x16xf32>
    %c0_81 = arith.constant 0 : index
    %c1_82 = arith.constant 1 : index
    %c0_83 = arith.constant 0 : index
    %53 = vector.load %arg4[%c0_81, %c1_82, %c0_83] : memref<2x22x16xf32, #tpu.memory_space<vmem>>, vector<2x16x16xf32>
    %c0_84 = arith.constant 0 : index
    %c5_85 = arith.constant 5 : index
    %c0_86 = arith.constant 0 : index
    %54 = vector.load %arg4[%c0_84, %c5_85, %c0_86] : memref<2x22x16xf32, #tpu.memory_space<vmem>>, vector<2x16x16xf32>
    %55 = arith.addf %53, %54 : vector<2x16x16xf32>
    %cst_87 = arith.constant 0.0540055819 : f32
    %56 = vector.broadcast %cst_87 : f32 to vector<2x16x16xf32>
    %57 = arith.mulf %56, %55 : vector<2x16x16xf32>
    %c0_88 = arith.constant 0 : index
    %c2_89 = arith.constant 2 : index
    %c0_90 = arith.constant 0 : index
    %58 = vector.load %arg4[%c0_88, %c2_89, %c0_90] : memref<2x22x16xf32, #tpu.memory_space<vmem>>, vector<2x16x16xf32>
    %c0_91 = arith.constant 0 : index
    %c4_92 = arith.constant 4 : index
    %c0_93 = arith.constant 0 : index
    %59 = vector.load %arg4[%c0_91, %c4_92, %c0_93] : memref<2x22x16xf32, #tpu.memory_space<vmem>>, vector<2x16x16xf32>
    %60 = arith.addf %58, %59 : vector<2x16x16xf32>
    %cst_94 = arith.constant 0.242036223 : f32
    %61 = vector.broadcast %cst_94 : f32 to vector<2x16x16xf32>
    %62 = arith.mulf %61, %60 : vector<2x16x16xf32>
    %c0_95 = arith.constant 0 : index
    %c3_96 = arith.constant 3 : index
    %c0_97 = arith.constant 0 : index
    %63 = vector.load %arg4[%c0_95, %c3_96, %c0_97] : memref<2x22x16xf32, #tpu.memory_space<vmem>>, vector<2x16x16xf32>
    %cst_98 = arith.constant 0.399050266 : f32
    %64 = vector.broadcast %cst_98 : f32 to vector<2x16x16xf32>
    %65 = arith.mulf %64, %63 : vector<2x16x16xf32>
    %66 = arith.addf %52, %57 : vector<2x16x16xf32>
    %67 = arith.addf %66, %62 : vector<2x16x16xf32>
    %68 = arith.addf %67, %65 : vector<2x16x16xf32>
    %c0_99 = arith.constant 0 : index
    %c0_100 = arith.constant 0 : index
    %c0_101 = arith.constant 0 : index
    %69 = vector.load %arg2[%c0_99, %c0_100, %c0_101] : memref<2x16x16xf32, #tpu.memory_space<vmem>>, vector<2x16x16xf32>
    tpu.vector_store %arg2[%c0_99, %c0_100, %c0_101], %68 {strides = array<i32>} : memref<2x16x16xf32, #tpu.memory_space<vmem>>, vector<2x16x16xf32>,
    return
  }
  func.func @transform_0(%arg0: i32) -> (i32, i32, i32) {
    %c0_i32 = arith.constant 0 : i32
    %c0_i32_0 = arith.constant 0 : i32
    %c0_i32_1 = arith.constant 0 : i32
    return %arg0, %c0_i32, %c0_i32_0 : i32, i32, i32
  }
  func.func @transform_1(%arg0: i32) -> (i32, i32, i32) {
    %c0_i32 = arith.constant 0 : i32
    %c0_i32_0 = arith.constant 0 : i32
    %c0_i32_1 = arith.constant 0 : i32
    return %arg0, %c0_i32, %c0_i32_0 : i32, i32, i32
  }
}

</mosaic_0001>

<llo_original>
// kernel: tpu_custom_call.1
$region0: #{tpu_custom_call.1}
  #allocation0 [shape = 'u32[]', space=smem, size = 0x4, offset = 0x4, fixed_abs, tag = 'smem constant byte address 0x4 - core index']
  #allocation1 [shape = 'u32[144,128]{1,0:T(1,128)}', space=vmem, size = 0x12000, scoped, tag = 'internal scratch']
  #allocation2 [shape = 'f32[2,22,22]{2,1,0:T(8,128)}', space=vmem, size = 0x6000, scoped, tag = 'scratch operand']
  #allocation3 [shape = 'f32[2,22,16]{2,1,0:T(8,128)}', space=vmem, size = 0x6000, scoped, tag = 'scratch operand']
  %s0 = inlined_call_operand.hbm [shape: f32[8,16,16], index: 0, kind: input, shape index: {}]
  %s1 = inlined_call_operand.hbm [shape: f32[8,16,16], index: 1, kind: output, shape index: {}]
  %s2 = sld [smem:[#allocation0]]
  $region41: #{tpu_custom_call.1} parent=0
    _
  %s4 = ssub.s32 1, %s2
  %s5 = scalar_select 0, %s4, %s2
  $region1: #{tpu_custom_call.1} parent=0
    #allocation4 [shape = 'u8[32768]{0}', space=vmem, size = 0x8000, scoped, tag = 'input window, operand 0']
    #allocation5 [shape = 's32[2]{0}', space=sflag, size = 0x8, scoped, tag = 'scoped memory for tpu_custom_call.1']
    #allocation6 [shape = 's32[2]{0}', space=sflag, size = 0x8, scoped, tag = 'scoped memory for tpu_custom_call.1']
    #allocation7 [shape = 'u8[32768]{0}', space=vmem, size = 0x8000, scoped, tag = 'output window, operand 0']
    %6 = vsyncpa [#allocation5], 0
    %s7 = scalar_lea.sflag [#allocation5], 1
    %8 = vsyncpa %s7, 0
    %9 = vsyncpa [#allocation6], 0
    %s10 = scalar_lea.sflag [#allocation6], 1
    %11 = vsyncpa %s10, 0
    loop: start=0, step=1, limit=6
    $region2: #{tpu_custom_call.1} parent=1 // loop_pre_header
      _
    $region3: #{tpu_custom_call.1} parent=1 // loop_header
      %s13 = sphi 0, %s17
      %p14 = scmp.ge.s32.totalorder %s13, 6
      %s23 = sphi 0, %s25
      %s26 = sphi 0, %s23
      %s27 = sphi 0, %s26
      %s43 = sphi 0, %s27
      %s49 = sphi 0, %s51
      %s52 = sphi 0, %s49
      %s53 = sphi 0, %s52
      %s69 = sphi 0, %s53
    $region4: #{tpu_custom_call.1} parent=1 // loop_header_branch
      %16 = sbr.rel (%p14) target = $region8
    $region5: #{tpu_custom_call.1} parent=1 // loop_body
      %s18 = ssub.s32 %s13, 1
      %s19 = ssub.s32 %s13, 2
      %s20 = sadd.s32 %s13, 1
      %s21 = ssub.s32 %s13, %s20
      %p22 = scmp.eq.s32.totalorder %s21, 0
      %s24 = sadd.s32 %s23, 1
      %s25 = scalar_select %p22, %s23, %s24
      %p28 = pneg %p22
      %p29 = scmp.eq.s32.totalorder %s13, 3
      %p30 = por %p28, %p29
      %p31 = scmp.ne.s32.totalorder %s23, %s26
      %p32 = scmp.eq.s32.totalorder %s13, 0
      %p33 = por %p31, %p32
      %p34 = scmp.ne.s32.totalorder %s23, %s26
      %p35 = scmp.eq.s32.totalorder %s18, 3
      %p36 = por %p34, %p35
      %p37 = scmp.ne.s32.totalorder %s26, %s27
      %p38 = scmp.eq.s32.totalorder %s18, 0
      %p39 = por %p37, %p38
      %p40 = scmp.ne.s32.totalorder %s26, %s27
      %p41 = scmp.eq.s32.totalorder %s19, 3
      %p42 = por %p40, %p41
      %p44 = scmp.ne.s32.totalorder %s27, %s43
      %p45 = scmp.eq.s32.totalorder %s19, 0
      %p46 = por %p44, %p45
      %s47 = ssub.s32 %s13, %s20
      %p48 = scmp.eq.s32.totalorder %s47, 0
      %s50 = sadd.s32 %s49, 1
      %s51 = scalar_select %p48, %s49, %s50
      %p54 = pneg %p48
      %p55 = scmp.eq.s32.totalorder %s13, 3
      %p56 = por %p54, %p55
      %p57 = scmp.ne.s32.totalorder %s49, %s52
      %p58 = scmp.eq.s32.totalorder %s13, 0
      %p59 = por %p57, %p58
      %p60 = scmp.ne.s32.totalorder %s49, %s52
      %p61 = scmp.eq.s32.totalorder %s18, 3
      %p62 = por %p60, %p61
      %p63 = scmp.ne.s32.totalorder %s52, %s53
      %p64 = scmp.eq.s32.totalorder %s18, 0
      %p65 = por %p63, %p64
      %p66 = scmp.ne.s32.totalorder %s52, %s53
      %p67 = scmp.eq.s32.totalorder %s19, 3
      %p68 = por %p66, %p67
      %p70 = scmp.ne.s32.totalorder %s53, %s69
      %p71 = scmp.eq.s32.totalorder %s19, 0
      %p72 = por %p70, %p71
      %p73 = scmp.le.s32.totalorder 1, %s13
      %p74 = scmp.lt.s32.totalorder %s13, 5
      %p75 = pnand %p73, %p74
      %p76 = pneg %p75
      // Predicated region
      $region9: #{tpu_custom_call.1} parent=5 // pred_check
        _
      $region10: #{tpu_custom_call.1} parent=5 // pred_check_branch
        %78 = sbr.rel (%p75) target = $region12
      $region11: #{tpu_custom_call.1} parent=5 // pred_region
        %s79 = ssub.s32 %s13, 1
      $region12: #{tpu_custom_call.1} parent=5 // pred_fallthru
        _
      %p80 = scmp.lt.s32.totalorder %s13, 4
      // Predicated region
      $region13: #{tpu_custom_call.1} parent=5 // pred_check
        %p81 = pneg %p80
      $region14: #{tpu_custom_call.1} parent=5 // pred_check_branch
        %83 = sbr.rel (%p81) target = $region16
      $region15: #{tpu_custom_call.1} parent=5 // pred_region
        // Predicated region
        $region17: #{tpu_custom_call.1} parent=15 // pred_check
          %p84 = pneg %p33
        $region18: #{tpu_custom_call.1} parent=15 // pred_check_branch
          %86 = sbr.rel (%p84) target = $region20
        $region19: #{tpu_custom_call.1} parent=15 // pred_region
          %s87 = sand.u32 %s23, 1
          %s88 = scalar_lea.sflag [#allocation5], %s87
          %s89 = sand.u32 %s23, 1
          %s90 = smul.addr %s89, 32
          %s91 = scalar_lea.vmem [#allocation4], %s90
          %s92 = smul.u32 2, %s13
          %s94 = ssub.s32 512, 512
          %95 = vsyncadd %s88, %s94
          %s96 = smul.addr %s92, 2
          %s97 = smul.addr %s96, 128
          %s98 = scalar_lea.hbm %s0, %s97
          %s99 = sshll.u32 %s91, 4
          %s100 = int_to_ptr.vmem [resolvable:$true] %s99
          %105 = dma.hbm_to_vmem [thread:$0]  %s98, 512, %s100, %s88, 128, 128, 8
        $region20: #{tpu_custom_call.1} parent=15 // pred_fallthru
          _
      $region16: #{tpu_custom_call.1} parent=5 // pred_fallthru
        _
      %p106 = scmp.le.s32.totalorder 1, %s13
      %p107 = scmp.lt.s32.totalorder %s13, 5
      %p108 = pnand %p106, %p107
      %p109 = pneg %p108
      // Predicated region
      $region21: #{tpu_custom_call.1} parent=5 // pred_check
        _
      $region22: #{tpu_custom_call.1} parent=5 // pred_check_branch
        %111 = sbr.rel (%p108) target = $region24
      $region23: #{tpu_custom_call.1} parent=5 // pred_region
        %s112 = ssub.s32 %s13, 1
        %s113 = sand.u32 %s26, 1
        %s114 = scalar_lea.sflag [#allocation5], %s113
        %s115 = sand.u32 %s26, 1
        %s116 = smul.addr %s115, 32
        %s117 = scalar_lea.vmem [#allocation4], %s116
        // Predicated region
        $region25: #{tpu_custom_call.1} parent=23 // pred_check
          %p118 = pneg %p39
        $region26: #{tpu_custom_call.1} parent=23 // pred_check_branch
          %120 = sbr.rel (%p118) target = $region28
        $region27: #{tpu_custom_call.1} parent=23 // pred_region
          %121 = dma.done %s114, 512
        $region28: #{tpu_custom_call.1} parent=23 // pred_fallthru
          _
        %s122 = sand.u32 %s26, 1
        %s123 = scalar_lea.sflag [#allocation5], %s122
        %s124 = sand.u32 %s26, 1
        %s125 = smul.addr %s124, 32
        %s126 = scalar_lea.vmem [#allocation4], %s125
        %p127 = pneg %p39
        %p128 = pneg %p36
        %p129 = pneg %p65
        %p130 = pneg %p62
        %s131 = sand.u32 %s52, 1
        %s132 = scalar_lea.sflag [#allocation6], %s131
        %s133 = sand.u32 %s52, 1
        %s134 = smul.addr %s133, 32
        %s135 = scalar_lea.vmem [#allocation7], %s134
        %s136 = smul.u32 2, %s18
        %s137 = smul.u32 2, %s18
        %v138 = vld [vmem:[%s117] sm:$0xff]
        %v139 = vld [vmem:[%s117 + $0x8] sm:$0xff]
        %v140 = vld [vmem:[%s117 + $0x10] sm:$0xff]
        %v141 = vld [vmem:[%s117 + $0x18] sm:$0xff]
        %146 = vrot.lane.b32.xlu0 %v138, 3
        %v147 = vpop.permute.xlu0 %146
        %148 = vrot.lane.b32.xlu0 %v139, 3
        %v149 = vpop.permute.xlu0 %148
        %150 = vrot.lane.b32.xlu0 %v140, 3
        %v151 = vpop.permute.xlu0 %150
        %152 = vrot.lane.b32.xlu0 %v141, 3
        %v153 = vpop.permute.xlu0 %152
        %vm158 = vcmask 154648
        %159 = vst.msk [vmem:[#allocation2 + $0x3] sm:$0xff] %vm158, %v147
        %160 = vst.msk [vmem:[#allocation2 + $0xb] sm:$0xff] %vm158, %v149
        %161 = vst.msk [vmem:[#allocation2 + $0x1b] sm:$0xff] %vm158, %v151
        %162 = vst.msk [vmem:[#allocation2 + $0x23] sm:$0xff] %vm158, %v153
        %163 = vrot.lane.b32.xlu0 %v138, 125
        %v164 = vpop.permute.xlu0 %163
        %165 = vrot.lane.b32.xlu0 %v139, 125
        %v166 = vpop.permute.xlu0 %165
        %167 = vrot.lane.b32.xlu0 %v140, 125
        %v168 = vpop.permute.xlu0 %167
        %169 = vrot.lane.b32.xlu0 %v141, 125
        %v170 = vpop.permute.xlu0 %169
        %vm175 = vcmask 7168
        %176 = vst.msk [vmem:[#allocation2 + $0x3] sm:$0xff] %vm175, %v164
        %177 = vst.msk [vmem:[#allocation2 + $0xb] sm:$0xff] %vm175, %v166
        %178 = vst.msk [vmem:[#allocation2 + $0x1b] sm:$0xff] %vm175, %v168
        %179 = vst.msk [vmem:[#allocation2 + $0x23] sm:$0xff] %vm175, %v170
        %180 = vrot.lane.b32.xlu0 %v138, 127
        %v181 = vpop.permute.xlu0 %180
        %182 = vrot.lane.b32.xlu0 %v139, 127
        %v183 = vpop.permute.xlu0 %182
        %184 = vrot.lane.b32.xlu0 %v140, 127
        %v185 = vpop.permute.xlu0 %184
        %186 = vrot.lane.b32.xlu0 %v141, 127
        %v187 = vpop.permute.xlu0 %186
        %vm192 = vcmask 15368
        %193 = vst.msk [vmem:[#allocation2 + $0x3] sm:$0xff] %vm192, %v181
        %194 = vst.msk [vmem:[#allocation2 + $0xb] sm:$0xff] %vm192, %v183
        %195 = vst.msk [vmem:[#allocation2 + $0x1b] sm:$0xff] %vm192, %v185
        %196 = vst.msk [vmem:[#allocation2 + $0x23] sm:$0xff] %vm192, %v187
        %197 = vrot.lane.b32.xlu0 %v138, 1
        %v198 = vpop.permute.xlu0 %197
        %199 = vrot.lane.b32.xlu0 %v139, 1
        %v200 = vpop.permute.xlu0 %199
        %201 = vrot.lane.b32.xlu0 %v140, 1
        %v202 = vpop.permute.xlu0 %201
        %203 = vrot.lane.b32.xlu0 %v141, 1
        %v204 = vpop.permute.xlu0 %203
        %vm209 = vcmask 23568
        %210 = vst.msk [vmem:[#allocation2 + $0x3] sm:$0xff] %vm209, %v198
        %211 = vst.msk [vmem:[#allocation2 + $0xb] sm:$0xff] %vm209, %v200
        %212 = vst.msk [vmem:[#allocation2 + $0x1b] sm:$0xff] %vm209, %v202
        %213 = vst.msk [vmem:[#allocation2 + $0x23] sm:$0xff] %vm209, %v204
        %214 = vrot.lane.b32.xlu0 %v138, 5
        %v215 = vpop.permute.xlu0 %214
        %216 = vrot.lane.b32.xlu0 %v139, 5
        %v217 = vpop.permute.xlu0 %216
        %218 = vrot.lane.b32.xlu0 %v140, 5
        %v219 = vpop.permute.xlu0 %218
        %220 = vrot.lane.b32.xlu0 %v141, 5
        %v221 = vpop.permute.xlu0 %220
        %vm226 = vcmask 162968
        %227 = vst.msk [vmem:[#allocation2 + $0x3] sm:$0xff] %vm226, %v215
        %228 = vst.msk [vmem:[#allocation2 + $0xb] sm:$0xff] %vm226, %v217
        %229 = vst.msk [vmem:[#allocation2 + $0x1b] sm:$0xff] %vm226, %v219
        %230 = vst.msk [vmem:[#allocation2 + $0x23] sm:$0xff] %vm226, %v221
        %231 = vrot.lane.b32.xlu0 %v138, 7
        %v232 = vpop.permute.xlu0 %231
        %233 = vrot.lane.b32.xlu0 %v139, 7
        %v234 = vpop.permute.xlu0 %233
        %235 = vrot.lane.b32.xlu0 %v140, 7
        %v236 = vpop.permute.xlu0 %235
        %237 = vrot.lane.b32.xlu0 %v141, 7
        %v238 = vpop.permute.xlu0 %237
        %vm243 = vcmask 171168
        %244 = vst.msk [vmem:[#allocation2 + $0x3] sm:$0xff] %vm243, %v232
        %245 = vst.msk [vmem:[#allocation2 + $0xb] sm:$0xff] %vm243, %v234
        %246 = vst.msk [vmem:[#allocation2 + $0x1b] sm:$0xff] %vm243, %v236
        %247 = vst.msk [vmem:[#allocation2 + $0x23] sm:$0xff] %vm243, %v238
        %248 = vrot.lane.b32.xlu0 %v138, 9
        %v249 = vpop.permute.xlu0 %248
        %250 = vrot.lane.b32.xlu0 %v139, 9
        %v251 = vpop.permute.xlu0 %250
        %252 = vrot.lane.b32.xlu0 %v140, 9
        %v253 = vpop.permute.xlu0 %252
        %254 = vrot.lane.b32.xlu0 %v141, 9
        %v255 = vpop.permute.xlu0 %254
        %vm260 = vcmask 179368
        %261 = vst.msk [vmem:[#allocation2 + $0x3] sm:$0xff] %vm260, %v249
        %262 = vst.msk [vmem:[#allocation2 + $0xb] sm:$0xff] %vm260, %v251
        %263 = vst.msk [vmem:[#allocation2 + $0x1b] sm:$0xff] %vm260, %v253
        %264 = vst.msk [vmem:[#allocation2 + $0x23] sm:$0xff] %vm260, %v255
        %v265 = vld [vmem:[#allocation2 + $0x6] sm:$0x1]
        %v266 = vld [vmem:[#allocation2 + $0x1e] sm:$0x1]
        %vm267 = vcmask 172032
        %268 = vst.msk [vmem:[#allocation2] sm:$0x1] %vm267, %v265
        %269 = vst.msk [vmem:[#allocation2 + $0x18] sm:$0x1] %vm267, %v266
        %v270 = vld [vmem:[#allocation2 + $0x5] sm:$0x1]
        %v271 = vld [vmem:[#allocation2 + $0x1d] sm:$0x1]
        %272 = vst.msk [vmem:[#allocation2 + $0x1] sm:$0x1] %vm267, %v270
        %273 = vst.msk [vmem:[#allocation2 + $0x19] sm:$0x1] %vm267, %v271
        %v274 = vld [vmem:[#allocation2 + $0x4] sm:$0x1]
        %v275 = vld [vmem:[#allocation2 + $0x1c] sm:$0x1]
        %276 = vst.msk [vmem:[#allocation2 + $0x2] sm:$0x1] %vm267, %v274
        %277 = vst.msk [vmem:[#allocation2 + $0x1a] sm:$0x1] %vm267, %v275
        %v278 = vld [vmem:[#allocation2 + $0x11] sm:$0x1]
        %v279 = vld [vmem:[#allocation2 + $0x29] sm:$0x1]
        %280 = vst.msk [vmem:[#allocation2 + $0x13] sm:$0x1] %vm267, %v278
        %281 = vst.msk [vmem:[#allocation2 + $0x2b] sm:$0x1] %vm267, %v279
        %v282 = vld [vmem:[#allocation2 + $0x10] sm:$0x1]
        %v283 = vld [vmem:[#allocation2 + $0x28] sm:$0x1]
        %284 = vst.msk [vmem:[#allocation2 + $0x14] sm:$0x1] %vm267, %v282
        %285 = vst.msk [vmem:[#allocation2 + $0x2c] sm:$0x1] %vm267, %v283
        %v286 = vld [vmem:[#allocation2 + $0xf] sm:$0x1]
        %v287 = vld [vmem:[#allocation2 + $0x27] sm:$0x1]
        %288 = vst.msk [vmem:[#allocation2 + $0x15] sm:$0x1] %vm267, %v286
        %289 = vst.msk [vmem:[#allocation2 + $0x2d] sm:$0x1] %vm267, %v287
        %v290 = vld [vmem:[#allocation2] sm:$0xff]
        %v291 = vld [vmem:[#allocation2 + $0x8] sm:$0xff]
        %v292 = vld [vmem:[#allocation2 + $0x10] sm:$0x3f]
        %v293 = vld [vmem:[#allocation2 + $0x18] sm:$0xff]
        %v294 = vld [vmem:[#allocation2 + $0x20] sm:$0xff]
        %v295 = vld [vmem:[#allocation2 + $0x28] sm:$0x3f]
        %302 = vrot.lane.b32.xlu0 %v290, 122
        %v303 = vpop.permute.xlu0 %302
        %304 = vrot.lane.b32.xlu0 %v291, 122
        %v305 = vpop.permute.xlu0 %304
        %306 = vrot.lane.b32.xlu0 %v292, 122
        %v307 = vpop.permute.xlu0 %306
        %308 = vrot.lane.b32.xlu0 %v293, 122
        %v309 = vpop.permute.xlu0 %308
        %310 = vrot.lane.b32.xlu0 %v294, 122
        %v311 = vpop.permute.xlu0 %310
        %312 = vrot.lane.b32.xlu0 %v295, 122
        %v313 = vpop.permute.xlu0 %312
        %v320 = vadd.f32 %v290, %v303
        %v321 = vadd.f32 %v291, %v305
        %v322 = vadd.f32 %v292, %v307
        %v323 = vadd.f32 %v293, %v309
        %v324 = vadd.f32 %v294, %v311
        %v325 = vadd.f32 %v295, %v313
        %v326 = vmul.f32 %v320, 0.004433048
        %v327 = vmul.f32 %v321, 0.004433048
        %v328 = vmul.f32 %v322, 0.004433048
        %v329 = vmul.f32 %v323, 0.004433048
        %v330 = vmul.f32 %v324, 0.004433048
        %v331 = vmul.f32 %v325, 0.004433048
        %332 = vrot.lane.b32.xlu0 %v290, 124
        %v333 = vpop.permute.xlu0 %332
        %334 = vrot.lane.b32.xlu0 %v291, 124
        %v335 = vpop.permute.xlu0 %334
        %336 = vrot.lane.b32.xlu0 %v292, 124
        %v337 = vpop.permute.xlu0 %336
        %338 = vrot.lane.b32.xlu0 %v293, 124
        %v339 = vpop.permute.xlu0 %338
        %340 = vrot.lane.b32.xlu0 %v294, 124
        %v341 = vpop.permute.xlu0 %340
        %342 = vrot.lane.b32.xlu0 %v295, 124
        %v343 = vpop.permute.xlu0 %342
        %v350 = vadd.f32 %v290, %v333
        %v351 = vadd.f32 %v291, %v335
        %v352 = vadd.f32 %v292, %v337
        %v353 = vadd.f32 %v293, %v339
        %v354 = vadd.f32 %v294, %v341
        %v355 = vadd.f32 %v295, %v343
        %v356 = vmul.f32 %v350, 0.054005582
        %v357 = vmul.f32 %v351, 0.054005582
        %v358 = vmul.f32 %v352, 0.054005582
        %v359 = vmul.f32 %v353, 0.054005582
        %v360 = vmul.f32 %v354, 0.054005582
        %v361 = vmul.f32 %v355, 0.054005582
        %362 = vrot.lane.b32.xlu0 %v290, 126
        %v363 = vpop.permute.xlu0 %362
        %364 = vrot.lane.b32.xlu0 %v291, 126
        %v365 = vpop.permute.xlu0 %364
        %366 = vrot.lane.b32.xlu0 %v292, 126
        %v367 = vpop.permute.xlu0 %366
        %368 = vrot.lane.b32.xlu0 %v293, 126
        %v369 = vpop.permute.xlu0 %368
        %370 = vrot.lane.b32.xlu0 %v294, 126
        %v371 = vpop.permute.xlu0 %370
        %372 = vrot.lane.b32.xlu0 %v295, 126
        %v373 = vpop.permute.xlu0 %372
        %v380 = vadd.f32 %v290, %v363
        %v381 = vadd.f32 %v291, %v365
        %v382 = vadd.f32 %v292, %v367
        %v383 = vadd.f32 %v293, %v369
        %v384 = vadd.f32 %v294, %v371
        %v385 = vadd.f32 %v295, %v373
        %v386 = vmul.f32 %v380, 0.24203622
        %v387 = vmul.f32 %v381, 0.24203622
        %v388 = vmul.f32 %v382, 0.24203622
        %v389 = vmul.f32 %v383, 0.24203622
        %v390 = vmul.f32 %v384, 0.24203622
        %v391 = vmul.f32 %v385, 0.24203622
        %v392 = vmul.f32 %v290, 0.39905027
        %v393 = vmul.f32 %v291, 0.39905027
        %v394 = vmul.f32 %v292, 0.39905027
        %v395 = vmul.f32 %v293, 0.39905027
        %v396 = vmul.f32 %v294, 0.39905027
        %v397 = vmul.f32 %v295, 0.39905027
        %404 = vrot.lane.b32.xlu0 %v356, 127
        %v405 = vpop.permute.xlu0 %404
        %406 = vrot.lane.b32.xlu0 %v357, 127
        %v407 = vpop.permute.xlu0 %406
        %408 = vrot.lane.b32.xlu0 %v358, 127
        %v409 = vpop.permute.xlu0 %408
        %410 = vrot.lane.b32.xlu0 %v359, 127
        %v411 = vpop.permute.xlu0 %410
        %412 = vrot.lane.b32.xlu0 %v360, 127
        %v413 = vpop.permute.xlu0 %412
        %414 = vrot.lane.b32.xlu0 %v361, 127
        %v415 = vpop.permute.xlu0 %414
        %v422 = vadd.f32 %v326, %v405
        %v423 = vadd.f32 %v327, %v407
        %v424 = vadd.f32 %v328, %v409
        %v425 = vadd.f32 %v329, %v411
        %v426 = vadd.f32 %v330, %v413
        %v427 = vadd.f32 %v331, %v415
        %434 = vrot.lane.b32.xlu0 %v386, 126
        %v435 = vpop.permute.xlu0 %434
        %436 = vrot.lane.b32.xlu0 %v387, 126
        %v437 = vpop.permute.xlu0 %436
        %438 = vrot.lane.b32.xlu0 %v388, 126
        %v439 = vpop.permute.xlu0 %438
        %440 = vrot.lane.b32.xlu0 %v389, 126
        %v441 = vpop.permute.xlu0 %440
        %442 = vrot.lane.b32.xlu0 %v390, 126
        %v443 = vpop.permute.xlu0 %442
        %444 = vrot.lane.b32.xlu0 %v391, 126
        %v445 = vpop.permute.xlu0 %444
        %v452 = vadd.f32 %v422, %v435
        %v453 = vadd.f32 %v423, %v437
        %v454 = vadd.f32 %v424, %v439
        %v455 = vadd.f32 %v425, %v441
        %v456 = vadd.f32 %v426, %v443
        %v457 = vadd.f32 %v427, %v445
        %464 = vrot.lane.b32.xlu0 %v392, 125
        %v465 = vpop.permute.xlu0 %464
        %466 = vrot.lane.b32.xlu0 %v393, 125
        %v467 = vpop.permute.xlu0 %466
        %468 = vrot.lane.b32.xlu0 %v394, 125
        %v469 = vpop.permute.xlu0 %468
        %470 = vrot.lane.b32.xlu0 %v395, 125
        %v471 = vpop.permute.xlu0 %470
        %472 = vrot.lane.b32.xlu0 %v396, 125
        %v473 = vpop.permute.xlu0 %472
        %474 = vrot.lane.b32.xlu0 %v397, 125
        %v475 = vpop.permute.xlu0 %474
        %v482 = vadd.f32 %v452, %v465
        %v483 = vadd.f32 %v453, %v467
        %v484 = vadd.f32 %v454, %v469
        %v485 = vadd.f32 %v455, %v471
        %v486 = vadd.f32 %v456, %v473
        %v487 = vadd.f32 %v457, %v475
        %vm488 = vcmask 130048
        %489 = vst.msk [vmem:[#allocation3] sm:$0xff] %vm488, %v482
        %490 = vst.msk [vmem:[#allocation3 + $0x8] sm:$0xff] %vm488, %v483
        %vm491 = vcmask 128000
        %492 = vst.msk [vmem:[#allocation3 + $0x10] sm:$0x3f] %vm491, %v484
        %493 = vst.msk [vmem:[#allocation3 + $0x18] sm:$0xff] %vm488, %v485
        %494 = vst.msk [vmem:[#allocation3 + $0x20] sm:$0xff] %vm488, %v486
        %495 = vst.msk [vmem:[#allocation3 + $0x28] sm:$0x3f] %vm491, %v487
        %v496 = vld [vmem:[#allocation3] sm:$0xff]
        %v497 = vld [vmem:[#allocation3 + $0x8] sm:$0xff]
        %v498 = vld [vmem:[#allocation3 + $0x18] sm:$0xff]
        %v499 = vld [vmem:[#allocation3 + $0x20] sm:$0xff]
        %v500 = vld [vmem:[#allocation3 + $0x6] sm:$0xff]
        %v501 = vld [vmem:[#allocation3 + $0xe] sm:$0xff]
        %v502 = vld [vmem:[#allocation3 + $0x1e] sm:$0xff]
        %v503 = vld [vmem:[#allocation3 + $0x26] sm:$0xff]
        %v504 = vadd.f32 %v496, %v500
        %v505 = vadd.f32 %v497, %v501
        %v506 = vadd.f32 %v498, %v502
        %v507 = vadd.f32 %v499, %v503
        %v508 = vmul.f32 %v504, 0.004433048
        %v509 = vmul.f32 %v505, 0.004433048
        %v510 = vmul.f32 %v506, 0.004433048
        %v511 = vmul.f32 %v507, 0.004433048
        %v512 = vld [vmem:[#allocation3 + $0x1] sm:$0xff]
        %v513 = vld [vmem:[#allocation3 + $0x9] sm:$0xff]
        %v514 = vld [vmem:[#allocation3 + $0x19] sm:$0xff]
        %v515 = vld [vmem:[#allocation3 + $0x21] sm:$0xff]
        %v516 = vld [vmem:[#allocation3 + $0x5] sm:$0xff]
        %v517 = vld [vmem:[#allocation3 + $0xd] sm:$0xff]
        %v518 = vld [vmem:[#allocation3 + $0x1d] sm:$0xff]
        %v519 = vld [vmem:[#allocation3 + $0x25] sm:$0xff]
        %v520 = vadd.f32 %v512, %v516
        %v521 = vadd.f32 %v513, %v517
        %v522 = vadd.f32 %v514, %v518
        %v523 = vadd.f32 %v515, %v519
        %v524 = vmul.f32 %v520, 0.054005582
        %v525 = vmul.f32 %v521, 0.054005582
        %v526 = vmul.f32 %v522, 0.054005582
        %v527 = vmul.f32 %v523, 0.054005582
        %v528 = vld [vmem:[#allocation3 + $0x2] sm:$0xff]
        %v529 = vld [vmem:[#allocation3 + $0xa] sm:$0xff]
        %v530 = vld [vmem:[#allocation3 + $0x1a] sm:$0xff]
        %v531 = vld [vmem:[#allocation3 + $0x22] sm:$0xff]
        %v532 = vld [vmem:[#allocation3 + $0x4] sm:$0xff]
        %v533 = vld [vmem:[#allocation3 + $0xc] sm:$0xff]
        %v534 = vld [vmem:[#allocation3 + $0x1c] sm:$0xff]
        %v535 = vld [vmem:[#allocation3 + $0x24] sm:$0xff]
        %v536 = vadd.f32 %v528, %v532
        %v537 = vadd.f32 %v529, %v533
        %v538 = vadd.f32 %v530, %v534
        %v539 = vadd.f32 %v531, %v535
        %v540 = vmul.f32 %v536, 0.24203622
        %v541 = vmul.f32 %v537, 0.24203622
        %v542 = vmul.f32 %v538, 0.24203622
        %v543 = vmul.f32 %v539, 0.24203622
        %v544 = vld [vmem:[#allocation3 + $0x3] sm:$0xff]
        %v545 = vld [vmem:[#allocation3 + $0xb] sm:$0xff]
        %v546 = vld [vmem:[#allocation3 + $0x1b] sm:$0xff]
        %v547 = vld [vmem:[#allocation3 + $0x23] sm:$0xff]
        %v548 = vmul.f32 %v544, 0.39905027
        %v549 = vmul.f32 %v545, 0.39905027
        %v550 = vmul.f32 %v546, 0.39905027
        %v551 = vmul.f32 %v547, 0.39905027
        %v552 = vadd.f32 %v508, %v524
        %v553 = vadd.f32 %v509, %v525
        %v554 = vadd.f32 %v510, %v526
        %v555 = vadd.f32 %v511, %v527
        %v556 = vadd.f32 %v552, %v540
        %v557 = vadd.f32 %v553, %v541
        %v558 = vadd.f32 %v554, %v542
        %v559 = vadd.f32 %v555, %v543
        %v560 = vadd.f32 %v556, %v548
        %v561 = vadd.f32 %v557, %v549
        %v562 = vadd.f32 %v558, %v550
        %v563 = vadd.f32 %v559, %v551
        %564 = vst.msk [vmem:[%s135] sm:$0xff] %vm488, %v560
        %565 = vst.msk [vmem:[%s135 + $0x8] sm:$0xff] %vm488, %v561
        %566 = vst.msk [vmem:[%s135 + $0x10] sm:$0xff] %vm488, %v562
        %567 = vst.msk [vmem:[%s135 + $0x18] sm:$0xff] %vm488, %v563
        %s568 = sand.u32 %s52, 1
        %s569 = scalar_lea.sflag [#allocation6], %s568
        %s570 = sand.u32 %s52, 1
        %s571 = smul.addr %s570, 32
        %s572 = scalar_lea.vmem [#allocation7], %s571
        // Predicated region
        $region29: #{tpu_custom_call.1} parent=23 // pred_check
          %p573 = pneg %p62
        $region30: #{tpu_custom_call.1} parent=23 // pred_check_branch
          %575 = sbr.rel (%p573) target = $region32
        $region31: #{tpu_custom_call.1} parent=23 // pred_region
          %s576 = smul.u32 2, %s18
          %s578 = ssub.s32 512, 512
          %579 = vsyncadd %s569, %s578
          %s580 = smul.addr %s576, 2
          %s581 = smul.addr %s580, 128
          %s582 = scalar_lea.hbm %s1, %s581
          %s583 = sshll.u32 %s572, 4
          %s584 = int_to_ptr.vmem [resolvable:$true] %s583
          %589 = dma.vmem_to_hbm [thread:$0]  %s584, 512, %s582, %s569, 128, 128, 8
        $region32: #{tpu_custom_call.1} parent=23 // pred_fallthru
          _
      $region24: #{tpu_custom_call.1} parent=5 // pred_fallthru
        _
      %p590 = scmp.le.s32.totalorder 2, %s13
      // Predicated region
      $region33: #{tpu_custom_call.1} parent=5 // pred_check
        %p591 = pneg %p590
      $region34: #{tpu_custom_call.1} parent=5 // pred_check_branch
        %593 = sbr.rel (%p591) target = $region36
      $region35: #{tpu_custom_call.1} parent=5 // pred_region
        %s594 = ssub.s32 %s13, 2
        // Predicated region
        $region37: #{tpu_custom_call.1} parent=35 // pred_check
          %p595 = pneg %p68
        $region38: #{tpu_custom_call.1} parent=35 // pred_check_branch
          %597 = sbr.rel (%p595) target = $region40
        $region39: #{tpu_custom_call.1} parent=35 // pred_region
          %s598 = sand.u32 %s53, 1
          %s599 = scalar_lea.sflag [#allocation6], %s598
          %s600 = sand.u32 %s53, 1
          %s601 = smul.addr %s600, 32
          %s602 = scalar_lea.vmem [#allocation7], %s601
          %603 = dma.done %s599, 512
        $region40: #{tpu_custom_call.1} parent=35 // pred_fallthru
          _
      $region36: #{tpu_custom_call.1} parent=5 // pred_fallthru
        _
    $region6: #{tpu_custom_call.1} parent=1 // loop_footer
      %s17 = sadd.s32 1, %s13
    $region7: #{tpu_custom_call.1} parent=1 // loop_footer_branch
      %12 = sbr.rel target = $region3
    $region8: #{tpu_custom_call.1} parent=1 // loop_exit
      _
    %604 = vsyncpa [#allocation5], 1
    %s605 = scalar_lea.sflag [#allocation5], 1
    %606 = vsyncpa %s605, 1
    %607 = vsyncpa [#allocation6], 1
    %s608 = scalar_lea.sflag [#allocation6], 1
    %609 = vsyncpa %s608, 1

</llo_original>
